<compile_context>
chip_gen: v7x
topology: tpu7x:2x2x1
jax: 0.10.0
libtpu: 0.0.40
codegen_flags: <defaults>
</compile_context>

<pallas_src>
import jax
import jax.numpy as jnp
from jax.experimental import pallas as pl
from jax.experimental.pallas import tpu as pltpu

LANE = 128  # lane-dense width for the packed (features | fused) output


# ------------------------- Pallas kernel ------------------------------------

def _capsule_fused_kernel(a_ref, w_ref, p_ref, out_ref):
    # a_ref : (tm, K)      bf16  concatenated im2col patches (+ ones column)
    # w_ref : (K, 128)     bf16  block-diagonal adapter weights (+ bias row,
    #                            + constant-one column for the fuser bias)
    # p_ref : (128, 128)   bf16  column-shifted fuser projections (+ bias row):
    #                            hidden lanes -> fused lanes [col0:col0+OUT]
    # out   : (tm, 128)    bf16  lanes [0 : n_adapt*HID]         = features
    #                            lane  [n_adapt*HID]             = 1.0 (carrier)
    #                            lanes [col0 : col0+OUT]         = fused output
    h = jnp.dot(a_ref[...], w_ref[...], preferred_element_type=jnp.float32)
    h = jnp.maximum(h, 0.0)                       # ReLU (adapter activation)
    fused = jnp.dot(h.astype(jnp.bfloat16), p_ref[...],
                    preferred_element_type=jnp.float32)
    # h is zero on the fused lanes and `fused` is zero on the feature lanes,
    # so a single add packs both into one full-width unmasked 128-lane store.
    out_ref[...] = (h + fused).astype(out_ref.dtype)


def capsule_fused(a_bf16, w_big, p_big, *, tm):
    M, K = a_bf16.shape
    assert M % tm == 0 and tm % 8 == 0
    return pl.pallas_call(
        _capsule_fused_kernel,
        out_shape=jax.ShapeDtypeStruct((M, LANE), jnp.bfloat16),
        grid_spec=pltpu.PrefetchScalarGridSpec(
            num_scalar_prefetch=0,
            grid=(M // tm,),
            in_specs=[pl.BlockSpec((tm, K), lambda i: (i, 0)),
                      pl.BlockSpec((K, LANE), lambda i: (0, 0)),      # resident
                      pl.BlockSpec((LANE, LANE), lambda i: (0, 0))],  # resident
            out_specs=pl.BlockSpec((tm, LANE), lambda i: (i, 0))),
        compiler_params=pltpu.CompilerParams(
            dimension_semantics=("parallel",)),   # v7x: shard tiles over 2 TCs
    )(a_bf16, w_big, p_big)


def _choose_tm(M, tm_max=1024):
    """Big tiles amortize the ~0.35us/step overhead; keep >=2 grid steps when
    feasible so megacore sharding and DMA/compute overlap still have work."""
    def rup8(x):
        return max(8, ((x + 7) // 8) * 8)
    tm = min(tm_max, rup8(M))
    if M > 16 and pl.cdiv(M, tm) < 2:
        tm = rup8(pl.cdiv(M, 2))
    return tm


# ------------------------- glue (plain JAX) ----------------------------------

def im2col_3x3(x_nhwc):
    """3x3, stride 1, pad 1 patch extraction -> [N*H*W, 9*C] ((kh,kw,C) order)."""
    N, H, W, C = x_nhwc.shape
    xp = jnp.pad(x_nhwc, ((0, 0), (1, 1), (1, 1), (0, 0)))
    patches = [xp[:, i:i + H, j:j + W, :] for i in range(3) for j in range(3)]
    return jnp.concatenate(patches, axis=-1).reshape(N * H * W, 9 * C)


def torch_conv3x3_weight_to_im2col(w_oihw):
    """PyTorch Conv2d weight [O, C, 3, 3] -> [9*C, O] in this file's
    (kh, kw, C) im2col column order (PyTorch's own flattening is (C, kh, kw),
    so a naive reshape would be silently wrong)."""
    O, C, KH, KW = w_oihw.shape
    return jnp.transpose(w_oihw, (2, 3, 1, 0)).reshape(KH * KW * C, O)


@jax.jit
def _capsule_forward_packed(inputs, w_big, p_big):
    """Patch build + pad + fused Pallas kernel, all under one jit so the
    im2col slices / concat / bf16 cast / pad fuse into a single XLA pass."""
    nhwc = [jnp.transpose(x, (0, 2, 3, 1)) for x in inputs]   # NCHW -> NHWC
    N, H, W, _ = nhwc[0].shape
    M = N * H * W
    cols = [im2col_3x3(x) for x in nhwc] + [jnp.ones((M, 1), jnp.float32)]
    a = jnp.concatenate(cols, axis=-1).astype(jnp.bfloat16)   # [M, kc] bf16
    tm = _choose_tm(M)
    m_pad = pl.cdiv(M, tm) * tm
    if m_pad != M:          # pad in bf16 (half the bytes of padding in f32)
        a = jnp.pad(a, ((0, m_pad - M), (0, 0)))
    packed = capsule_fused(a, w_big, p_big, tm=tm)
    return packed[:M]       # [M, 128] bf16: features | 1.0 | fused | zeros


class CapsuleCoAdapterPallas:
    """Mirrors Capsule_CoAdapter.forward: run adapters, fill features dict, fuse.

    All adapters + fuser execute in one fused Pallas kernel with a single
    packed 128-lane bf16 output."""

    def __init__(self, adapter_params, fuser_params, adapter_order):
        # adapter_params: list of (W [9*C_k, HID], b [HID]) in f32, (kh,kw,C)
        #                 im2col layout (see torch_conv3x3_weight_to_im2col).
        # fuser_params  : {order_key: P [HID, OUT], 'bias': [OUT]}
        self.order = dict(adapter_order)
        self.n_adapt = len(adapter_params)
        self.hid = adapter_params[0][0].shape[1]
        self.out_dim = int(fuser_params['bias'].reshape(-1).shape[0])
        self.k_sizes = [w.shape[0] for (w, _) in adapter_params]

        kc = sum(self.k_sizes) + 1                 # +1: ones column (adapter bias)
        hid_packed = self.n_adapt * self.hid + 1   # +1: const-one col (fuser bias)
        col0 = hid_packed                          # first fused-output lane
        # Packed single-output layout requires everything to fit in 128 lanes.
        assert hid_packed + self.out_dim <= LANE, (
            "hid_packed + OUT must be <= 128 for the packed output layout")
        self.kc = kc
        self.col0 = col0

        w_big = jnp.zeros((kc, LANE), jnp.float32)     # block-diag adapter weights
        p_big = jnp.zeros((LANE, LANE), jnp.float32)   # column-shifted fuser proj.
        r = 0
        for k, (w, b) in enumerate(adapter_params):
            kk = w.shape[0]
            c0 = k * self.hid
            w_big = w_big.at[r:r + kk, c0:c0 + self.hid].set(w)
            w_big = w_big.at[kc - 1, c0:c0 + self.hid].set(b.reshape(-1))
            p_big = p_big.at[c0:c0 + self.hid, col0:col0 + self.out_dim].set(
                fuser_params[self.order[k]])
            r += kk
        # constant-one hidden feature column -> carries the fuser bias.
        one_col = self.n_adapt * self.hid
        w_big = w_big.at[kc - 1, one_col].set(1.0)
        p_big = p_big.at[one_col, col0:col0 + self.out_dim].set(
            fuser_params['bias'].reshape(-1))

        self.w_big = w_big.astype(jnp.bfloat16)
        self.p_big = p_big.astype(jnp.bfloat16)
        self.features = None

    # kept (unpadded) for reference checks / debugging
    def _build_patches(self, args):
        nhwc = [jnp.transpose(x, (0, 2, 3, 1)) for x in args]
        N, H, W, _ = nhwc[0].shape
        M = N * H * W
        cols = [im2col_3x3(x) for x in nhwc] + [jnp.ones((M, 1), jnp.float32)]
        a = jnp.concatenate(cols, axis=-1).astype(jnp.bfloat16)
        return a, (N, H, W, M)

    def forward(self, *args):
        nchw0 = args[0]
        N, _, H, W = nchw0.shape
        packed = _capsule_forward_packed(tuple(args), self.w_big, self.p_big)

        self.features = {
            self.order[k]: packed[:, k * self.hid:(k + 1) * self.hid]
            .astype(jnp.float32).reshape(N, H, W, self.hid)
            for k in range(self.n_adapt)
        }
        fused = packed[:, self.col0:self.col0 + self.out_dim].astype(jnp.float32)
        return fused.reshape(N, H, W, self.out_dim)

    def get_adapter_features(self):
        return self.features


# ------------------------------ main ------------------------------------------

if __name__ == "__main__":
    key = jax.random.PRNGKey(0)
    ks = jax.random.split(key, 8)

    # Small shapes: batch=2, spatial=16, adapter-0 channels=4, adapter-1 channels=3.
    N, Hsp, Wsp = 2, 16, 16
    C1, C2 = 4, 3
    HID, OUT = 32, 32

    x_sketch = jax.random.normal(ks[0], (N, C1, Hsp, Wsp), jnp.float32)  # NCHW
    x_depth = jax.random.normal(ks[1], (N, C2, Hsp, Wsp), jnp.float32)   # NCHW

    w1 = 0.05 * jax.random.normal(ks[2], (9 * C1, HID), jnp.float32)
    b1 = 0.01 * jax.random.normal(ks[3], (HID,), jnp.float32)
    w2 = 0.05 * jax.random.normal(ks[4], (9 * C2, HID), jnp.float32)
    b2 = 0.01 * jax.random.normal(ks[5], (HID,), jnp.float32)
    p_sketch = 0.05 * jax.random.normal(ks[6], (HID, OUT), jnp.float32)
    p_depth = 0.05 * jax.random.normal(ks[7], (HID, OUT), jnp.float32)
    b_fuse = jnp.zeros((OUT,), jnp.float32)

    model = CapsuleCoAdapterPallas(
        adapter_params=[(w1, b1), (w2, b2)],
        fuser_params={'sketch': p_sketch, 'depth': p_depth, 'bias': b_fuse},
        adapter_order={0: 'sketch', 1: 'depth'},
    )

    out = jax.block_until_ready(model.forward(x_sketch, x_depth))
    feats = model.get_adapter_features()
    assert out.shape == (N, Hsp, Wsp, OUT)

    # ---- Loose check vs. full-f32 reference (kernel uses bf16 operands/output)
    def ref_adapter(x_nchw, w, b):
        x_nhwc = jnp.transpose(x_nchw, (0, 2, 3, 1))
        return jnp.maximum(im2col_3x3(x_nhwc) @ w + b, 0.0)

    f1_ref = ref_adapter(x_sketch, w1, b1)                 # [M, HID]
    f2_ref = ref_adapter(x_depth, w2, b2)                  # [M, HID]
    fused_ref = (f1_ref @ p_sketch + f2_ref @ p_depth + b_fuse
                 ).reshape(N, Hsp, Wsp, OUT)
    assert jnp.allclose(out, fused_ref, atol=3e-2, rtol=3e-2)
    assert jnp.allclose(feats['sketch'].reshape(-1, HID), f1_ref,
                        atol=3e-2, rtol=3e-2)
    assert jnp.allclose(feats['depth'].reshape(-1, HID), f2_ref,
                        atol=3e-2, rtol=3e-2)

    # ---- Tight check vs. a bf16-matched pure-JAX replica of the kernel math --
    a_mat, _ = model._build_patches((x_sketch, x_depth))
    h_t = jnp.maximum(
        jnp.dot(a_mat, model.w_big, preferred_element_type=jnp.float32), 0.0)
    fused_t = jnp.dot(h_t.astype(jnp.bfloat16), model.p_big,
                      preferred_element_type=jnp.float32)
    packed_t = (h_t + fused_t).astype(jnp.bfloat16)
    out_tight = packed_t[:, model.col0:model.col0 + OUT].astype(jnp.float32)
    assert jnp.allclose(out.reshape(-1, OUT), out_tight, atol=1e-2, rtol=1e-2)

    print("KERNEL_OK")
</pallas_src>

<mosaic_0001>
module attributes {stable_mosaic.version = 11 : i64} {
  func.func @_capsule_fused_kernel(%arg0: i32, %arg1: memref<256x64xbf16, #tpu.memory_space<vmem>>, %arg2: memref<64x128xbf16, #tpu.memory_space<vmem>>, %arg3: memref<128x128xbf16, #tpu.memory_space<vmem>>, %arg4: memref<256x128xbf16, #tpu.memory_space<vmem>>) attributes {dimension_semantics = [#tpu.dimension_semantics<parallel>], iteration_bounds = array<i64: 2>, scalar_prefetch = 0 : i64, scratch_operands = 0 : i64, tpu.core_type = #tpu.core_type<tc>, window_params = [{transform_indices = @transform_0, window_bounds = array<i64: 256, 64>}, {pipeline_mode = #tpu.pipeline_mode<synchronous>, transform_indices = @transform_1, window_bounds = array<i64: 64, 128>}, {pipeline_mode = #tpu.pipeline_mode<synchronous>, transform_indices = @transform_2, window_bounds = array<i64: 128, 128>}, {transform_indices = @transform_3, window_bounds = array<i64: 256, 128>}]} {
    %c0 = arith.constant 0 : index
    %c0_0 = arith.constant 0 : index
    %0 = vector.load %arg1[%c0, %c0_0] : memref<256x64xbf16, #tpu.memory_space<vmem>>, vector<256x64xbf16>
    %c0_1 = arith.constant 0 : index
    %c0_2 = arith.constant 0 : index
    %1 = vector.load %arg2[%c0_1, %c0_2] : memref<64x128xbf16, #tpu.memory_space<vmem>>, vector<64x128xbf16>
    %cst = arith.constant dense<0.000000e+00> : vector<256x128xf32>
    %2 = tpu.matmul %0, %1, %cst {dimension_numbers = #tpu.dot_dimension_numbers<[1], [0], [0], [1], [0, 0, 1, 1], [], []>} : vector<256x64xbf16>, vector<64x128xbf16>, vector<256x128xf32> -> vector<256x128xf32>
    %cst_3 = arith.constant 0.000000e+00 : f32
    %3 = vector.broadcast %cst_3 : f32 to vector<256x128xf32>
    %4 = arith.maximumf %2, %3 : vector<256x128xf32>
    %5 = arith.truncf %4 : vector<256x128xf32> to vector<256x128xbf16>
    %c0_4 = arith.constant 0 : index
    %c0_5 = arith.constant 0 : index
    %6 = vector.load %arg3[%c0_4, %c0_5] : memref<128x128xbf16, #tpu.memory_space<vmem>>, vector<128x128xbf16>
    %cst_6 = arith.constant dense<0.000000e+00> : vector<256x128xf32>
    %7 = tpu.matmul %5, %6, %cst_6 {dimension_numbers = #tpu.dot_dimension_numbers<[1], [0], [0], [1], [0, 0, 1, 1], [], []>} : vector<256x128xbf16>, vector<128x128xbf16>, vector<256x128xf32> -> vector<256x128xf32>
    %8 = arith.addf %4, %7 : vector<256x128xf32>
    %9 = arith.truncf %8 : vector<256x128xf32> to vector<256x128xbf16>
    %c0_7 = arith.constant 0 : index
    %c0_8 = arith.constant 0 : index
    %10 = vector.load %arg4[%c0_7, %c0_8] : memref<256x128xbf16, #tpu.memory_space<vmem>>, vector<256x128xbf16>
    tpu.vector_store %arg4[%c0_7, %c0_8], %9 {strides = array<i32>} : memref<256x128xbf16, #tpu.memory_space<vmem>>, vector<256x128xbf16>,
    return
  }
  func.func @transform_0(%arg0: i32) -> (i32, i32) {
    %c0_i32 = arith.constant 0 : i32
    %c0_i32_0 = arith.constant 0 : i32
    return %arg0, %c0_i32 : i32, i32
  }
  func.func @transform_1(%arg0: i32) -> (i32, i32) {
    %c0_i32 = arith.constant 0 : i32
    %c0_i32_0 = arith.constant 0 : i32
    %c0_i32_1 = arith.constant 0 : i32
    return %c0_i32, %c0_i32_0 : i32, i32
  }
  func.func @transform_2(%arg0: i32) -> (i32, i32) {
    %c0_i32 = arith.constant 0 : i32
    %c0_i32_0 = arith.constant 0 : i32
    %c0_i32_1 = arith.constant 0 : i32
    return %c0_i32, %c0_i32_0 : i32, i32
  }
  func.func @transform_3(%arg0: i32) -> (i32, i32) {
    %c0_i32 = arith.constant 0 : i32
    %c0_i32_0 = arith.constant 0 : i32
    return %arg0, %c0_i32 : i32, i32
  }
}

</mosaic_0001>

<llo_original>
// kernel: _capsule_forward_packed.1
$region0: #{_capsule_forward_packed.1}
  #allocation0 [shape = 'u32[]', space=smem, size = 0x4, offset = 0x4, fixed_abs, tag = 'smem constant byte address 0x4 - core index']
  #allocation1 [shape = 'u32[144,128]{1,0:T(1,128)}', space=vmem, size = 0x12000, scoped, tag = 'internal scratch']
  %s0 = inlined_call_operand.vmem [shape: bf16[512,64], index: 0, kind: input, shape index: {}]
  %s1 = inlined_call_operand.vmem [shape: bf16[64,128], index: 1, kind: input, shape index: {}]
  %s2 = inlined_call_operand.vmem [shape: bf16[128,128], index: 2, kind: input, shape index: {}]
  %s3 = inlined_call_operand.hbm [shape: bf16[512,128], index: 3, kind: output, shape index: {}]
  %s4 = sld [smem:[#allocation0]]
  $region45: #{_capsule_forward_packed.1} parent=0
    _
  %s6 = ssub.s32 1, %s4
  %s7 = scalar_select 0, %s6, %s4
  $region1: #{_capsule_forward_packed.1} parent=0
    #allocation2 [shape = 'u8[131072]{0}', space=vmem, size = 0x20000, scoped, tag = 'output window, operand 0']
    #allocation3 [shape = 's32[2]{0}', space=sflag, size = 0x8, scoped, tag = 'scoped memory for _capsule_forward_packed.1']
    %8 = vsyncpa [#allocation3], 0
    %s9 = scalar_lea.sflag [#allocation3], 1
    %10 = vsyncpa %s9, 0
    loop: start=0, step=1, limit=4
    $region2: #{_capsule_forward_packed.1} parent=1 // loop_pre_header
      _
    $region3: #{_capsule_forward_packed.1} parent=1 // loop_header
      %s12 = sphi 0, %s16
      %p13 = scmp.ge.s32.totalorder %s12, 4
      %s22 = sphi 0, %s24
      %s25 = sphi 0, %s22
      %s26 = sphi 0, %s25
      %s42 = sphi 0, %s26
      %s46 = sphi 0, %s46
      %s48 = sphi 0, %s46
      %s49 = sphi 0, %s48
      %s63 = sphi 0, %s49
      %s67 = sphi 0, %s67
      %s69 = sphi 0, %s67
      %s70 = sphi 0, %s69
      %s84 = sphi 0, %s70
      %s90 = sphi 0, %s92
      %s93 = sphi 0, %s90
      %s94 = sphi 0, %s93
      %s110 = sphi 0, %s94
    $region4: #{_capsule_forward_packed.1} parent=1 // loop_header_branch
      %15 = sbr.rel (%p13) target = $region8
    $region5: #{_capsule_forward_packed.1} parent=1 // loop_body
      %s17 = ssub.s32 %s12, 1
      %s18 = ssub.s32 %s12, 2
      %s19 = sadd.s32 %s12, 1
      %s20 = ssub.s32 %s12, %s19
      %p21 = scmp.eq.s32.totalorder %s20, 0
      %s23 = sadd.s32 %s22, 1
      %s24 = scalar_select %p21, %s22, %s23
      %p27 = pneg %p21
      %p28 = scmp.eq.s32.totalorder %s12, 1
      %p29 = por %p27, %p28
      %p30 = scmp.ne.s32.totalorder %s22, %s25
      %p31 = scmp.eq.s32.totalorder %s12, 0
      %p32 = por %p30, %p31
      %p33 = scmp.ne.s32.totalorder %s22, %s25
      %p34 = scmp.eq.s32.totalorder %s17, 1
      %p35 = por %p33, %p34
      %p36 = scmp.ne.s32.totalorder %s25, %s26
      %p37 = scmp.eq.s32.totalorder %s17, 0
      %p38 = por %p36, %p37
      %p39 = scmp.ne.s32.totalorder %s25, %s26
      %p40 = scmp.eq.s32.totalorder %s18, 1
      %p41 = por %p39, %p40
      %p43 = scmp.ne.s32.totalorder %s26, %s42
      %p44 = scmp.eq.s32.totalorder %s18, 0
      %p45 = por %p43, %p44
      %s47 = sadd.s32 %s46, 1
      %p50 = scmp.eq.s32.totalorder %s12, 1
      %p51 = scmp.ne.s32.totalorder %s46, %s48
      %p52 = scmp.eq.s32.totalorder %s12, 0
      %p53 = por %p51, %p52
      %p54 = scmp.ne.s32.totalorder %s46, %s48
      %p55 = scmp.eq.s32.totalorder %s17, 1
      %p56 = por %p54, %p55
      %p57 = scmp.ne.s32.totalorder %s48, %s49
      %p58 = scmp.eq.s32.totalorder %s17, 0
      %p59 = por %p57, %p58
      %p60 = scmp.ne.s32.totalorder %s48, %s49
      %p61 = scmp.eq.s32.totalorder %s18, 1
      %p62 = por %p60, %p61
      %p64 = scmp.ne.s32.totalorder %s49, %s63
      %p65 = scmp.eq.s32.totalorder %s18, 0
      %p66 = por %p64, %p65
      %s68 = sadd.s32 %s67, 1
      %p71 = scmp.eq.s32.totalorder %s12, 1
      %p72 = scmp.ne.s32.totalorder %s67, %s69
      %p73 = scmp.eq.s32.totalorder %s12, 0
      %p74 = por %p72, %p73
      %p75 = scmp.ne.s32.totalorder %s67, %s69
      %p76 = scmp.eq.s32.totalorder %s17, 1
      %p77 = por %p75, %p76
      %p78 = scmp.ne.s32.totalorder %s69, %s70
      %p79 = scmp.eq.s32.totalorder %s17, 0
      %p80 = por %p78, %p79
      %p81 = scmp.ne.s32.totalorder %s69, %s70
      %p82 = scmp.eq.s32.totalorder %s18, 1
      %p83 = por %p81, %p82
      %p85 = scmp.ne.s32.totalorder %s70, %s84
      %p86 = scmp.eq.s32.totalorder %s18, 0
      %p87 = por %p85, %p86
      %s88 = ssub.s32 %s12, %s19
      %p89 = scmp.eq.s32.totalorder %s88, 0
      %s91 = sadd.s32 %s90, 1
      %s92 = scalar_select %p89, %s90, %s91
      %p95 = pneg %p89
      %p96 = scmp.eq.s32.totalorder %s12, 1
      %p97 = por %p95, %p96
      %p98 = scmp.ne.s32.totalorder %s90, %s93
      %p99 = scmp.eq.s32.totalorder %s12, 0
      %p100 = por %p98, %p99
      %p101 = scmp.ne.s32.totalorder %s90, %s93
      %p102 = scmp.eq.s32.totalorder %s17, 1
      %p103 = por %p101, %p102
      %p104 = scmp.ne.s32.totalorder %s93, %s94
      %p105 = scmp.eq.s32.totalorder %s17, 0
      %p106 = por %p104, %p105
      %p107 = scmp.ne.s32.totalorder %s93, %s94
      %p108 = scmp.eq.s32.totalorder %s18, 1
      %p109 = por %p107, %p108
      %p111 = scmp.ne.s32.totalorder %s94, %s110
      %p112 = scmp.eq.s32.totalorder %s18, 0
      %p113 = por %p111, %p112
      %p114 = scmp.le.s32.totalorder 1, %s12
      %p115 = scmp.lt.s32.totalorder %s12, 3
      %p116 = pnand %p114, %p115
      %p117 = pneg %p116
      // Predicated region
      $region9: #{_capsule_forward_packed.1} parent=5 // pred_check
        _
      $region10: #{_capsule_forward_packed.1} parent=5 // pred_check_branch
        %119 = sbr.rel (%p116) target = $region12
      $region11: #{_capsule_forward_packed.1} parent=5 // pred_region
        %s120 = ssub.s32 %s12, 1
        // Predicated region
        $region13: #{_capsule_forward_packed.1} parent=11 // pred_check
          %p121 = pneg %p59
        $region14: #{_capsule_forward_packed.1} parent=11 // pred_check_branch
          %123 = sbr.rel (%p121) target = $region16
        $region15: #{_capsule_forward_packed.1} parent=11 // pred_region
          _
        $region16: #{_capsule_forward_packed.1} parent=11 // pred_fallthru
          _
        // Predicated region
        $region17: #{_capsule_forward_packed.1} parent=11 // pred_check
          %p124 = pneg %p80
        $region18: #{_capsule_forward_packed.1} parent=11 // pred_check_branch
          %126 = sbr.rel (%p124) target = $region20
        $region19: #{_capsule_forward_packed.1} parent=11 // pred_region
          _
        $region20: #{_capsule_forward_packed.1} parent=11 // pred_fallthru
          _
      $region12: #{_capsule_forward_packed.1} parent=5 // pred_fallthru
        _
      %p127 = scmp.lt.s32.totalorder %s12, 2
      // Predicated region
      $region21: #{_capsule_forward_packed.1} parent=5 // pred_check
        %p128 = pneg %p127
      $region22: #{_capsule_forward_packed.1} parent=5 // pred_check_branch
        %130 = sbr.rel (%p128) target = $region24
      $region23: #{_capsule_forward_packed.1} parent=5 // pred_region
        // Predicated region
        $region25: #{_capsule_forward_packed.1} parent=23 // pred_check
          %p131 = pneg %p32
        $region26: #{_capsule_forward_packed.1} parent=23 // pred_check_branch
          %133 = sbr.rel (%p131) target = $region28
        $region27: #{_capsule_forward_packed.1} parent=23 // pred_region
          %s134 = smul.u32 32, %s12
          %p135 = scmp.lt.s32.totalorder %s134, 63
          %s136 = scalar_select %p135, %s134, 63
          %s137 = smul.addr %s136, 4
          %s138 = scalar_lea.vmem %s0, %s137
          %s139 = smul.u32 32, %s12
        $region28: #{_capsule_forward_packed.1} parent=23 // pred_fallthru
          _
      $region24: #{_capsule_forward_packed.1} parent=5 // pred_fallthru
        _
      %p140 = scmp.le.s32.totalorder 1, %s12
      %p141 = scmp.lt.s32.totalorder %s12, 3
      %p142 = pnand %p140, %p141
      %p143 = pneg %p142
      // Predicated region
      $region29: #{_capsule_forward_packed.1} parent=5 // pred_check
        _
      $region30: #{_capsule_forward_packed.1} parent=5 // pred_check_branch
        %145 = sbr.rel (%p142) target = $region32
      $region31: #{_capsule_forward_packed.1} parent=5 // pred_region
        %s146 = ssub.s32 %s12, 1
        %s147 = smul.u32 32, %s17
        %p148 = scmp.lt.s32.totalorder %s147, 63
        %s149 = scalar_select %p148, %s147, 63
        %s150 = smul.addr %s149, 4
        %s151 = scalar_lea.vmem %s0, %s150
        %p152 = pneg %p38
        %p153 = pneg %p35
        %p154 = pneg %p59
        %p155 = pneg %p56
        %p156 = pneg %p80
        %p157 = pneg %p77
        %p158 = pneg %p106
        %p159 = pneg %p103
        %s160 = sand.u32 %s93, 1
        %s161 = scalar_lea.sflag [#allocation3], %s160
        %s162 = sand.u32 %s93, 1
        %s163 = smul.addr %s162, 128
        %s164 = scalar_lea.vmem [#allocation2], %s163
        %s165 = smul.u32 32, %s17
        %p166 = scmp.lt.s32.totalorder %s165, 63
        %s167 = scalar_select %p166, %s165, 63
        %s168 = smul.addr %s167, 4
        %s169 = scalar_lea.vmem %s0, %s168
        %s170 = smul.u32 32, %s17
        %s171 = smul.u32 32, %s17
        %v173 = vld [vmem:[%s169] sm:$0xf]
        %v174 = vld [vmem:[%s169 + $0x4] sm:$0xf]
        %v175 = vld [vmem:[%s169 + $0x8] sm:$0xf]
        %v176 = vld [vmem:[%s169 + $0xc] sm:$0xf]
        %v177 = vld [vmem:[%s169 + $0x10] sm:$0xf]
        %v178 = vld [vmem:[%s169 + $0x14] sm:$0xf]
        %v179 = vld [vmem:[%s169 + $0x18] sm:$0xf]
        %v180 = vld [vmem:[%s169 + $0x1c] sm:$0xf]
        %v181 = vld [vmem:[%s169 + $0x20] sm:$0xf]
        %v182 = vld [vmem:[%s169 + $0x24] sm:$0xf]
        %v183 = vld [vmem:[%s169 + $0x28] sm:$0xf]
        %v184 = vld [vmem:[%s169 + $0x2c] sm:$0xf]
        %v185 = vld [vmem:[%s169 + $0x30] sm:$0xf]
        %v186 = vld [vmem:[%s169 + $0x34] sm:$0xf]
        %v187 = vld [vmem:[%s169 + $0x38] sm:$0xf]
        %v188 = vld [vmem:[%s169 + $0x3c] sm:$0xf]
        %v189 = vld [vmem:[%s169 + $0x40] sm:$0xf]
        %v190 = vld [vmem:[%s169 + $0x44] sm:$0xf]
        %v191 = vld [vmem:[%s169 + $0x48] sm:$0xf]
        %v192 = vld [vmem:[%s169 + $0x4c] sm:$0xf]
        %v193 = vld [vmem:[%s169 + $0x50] sm:$0xf]
        %v194 = vld [vmem:[%s169 + $0x54] sm:$0xf]
        %v195 = vld [vmem:[%s169 + $0x58] sm:$0xf]
        %v196 = vld [vmem:[%s169 + $0x5c] sm:$0xf]
        %v197 = vld [vmem:[%s169 + $0x60] sm:$0xf]
        %v198 = vld [vmem:[%s169 + $0x64] sm:$0xf]
        %v199 = vld [vmem:[%s169 + $0x68] sm:$0xf]
        %v200 = vld [vmem:[%s169 + $0x6c] sm:$0xf]
        %v201 = vld [vmem:[%s169 + $0x70] sm:$0xf]
        %v202 = vld [vmem:[%s169 + $0x74] sm:$0xf]
        %v203 = vld [vmem:[%s169 + $0x78] sm:$0xf]
        %v204 = vld [vmem:[%s169 + $0x7c] sm:$0xf]
        %v205 = vld [vmem:[%s1] sm:$0xf]
        %v206 = vld [vmem:[%s1 + $0x4] sm:$0xf]
        %v207 = vld [vmem:[%s1 + $0x8] sm:$0xf]
        %v208 = vld [vmem:[%s1 + $0xc] sm:$0xf]
        %v209 = vld [vmem:[%s1 + $0x10] sm:$0xf]
        %v210 = vld [vmem:[%s1 + $0x14] sm:$0xf]
        %v211 = vld [vmem:[%s1 + $0x18] sm:$0xf]
        %v212 = vld [vmem:[%s1 + $0x1c] sm:$0xf]
        %v245 = vunpack.c.l.b16 %v173
        %v246 = vunpack.c.l.b16 %v174
        %v247 = vunpack.c.l.b16 %v175
        %v248 = vunpack.c.l.b16 %v176
        %v249 = vunpack.c.l.b16 %v177
        %v250 = vunpack.c.l.b16 %v178
        %v251 = vunpack.c.l.b16 %v179
        %v252 = vunpack.c.l.b16 %v180
        %v253 = vunpack.c.l.b16 %v181
        %v254 = vunpack.c.l.b16 %v182
        %v255 = vunpack.c.l.b16 %v183
        %v256 = vunpack.c.l.b16 %v184
        %v257 = vunpack.c.l.b16 %v185
        %v258 = vunpack.c.l.b16 %v186
        %v259 = vunpack.c.l.b16 %v187
        %v260 = vunpack.c.l.b16 %v188
        %v261 = vunpack.c.l.b16 %v189
        %v262 = vunpack.c.l.b16 %v190
        %v263 = vunpack.c.l.b16 %v191
        %v264 = vunpack.c.l.b16 %v192
        %v265 = vunpack.c.l.b16 %v193
        %v266 = vunpack.c.l.b16 %v194
        %v267 = vunpack.c.l.b16 %v195
        %v268 = vunpack.c.l.b16 %v196
        %v269 = vunpack.c.l.b16 %v197
        %v270 = vunpack.c.l.b16 %v198
        %v271 = vunpack.c.l.b16 %v199
        %v272 = vunpack.c.l.b16 %v200
        %v273 = vunpack.c.l.b16 %v201
        %v274 = vunpack.c.l.b16 %v202
        %v275 = vunpack.c.l.b16 %v203
        %v276 = vunpack.c.l.b16 %v204
        %v277 = vpack.c.b16 %v246, %v245
        %v278 = vpack.c.b16 %v248, %v247
        %v279 = vpack.c.b16 %v250, %v249
        %v280 = vpack.c.b16 %v252, %v251
        %v281 = vpack.c.b16 %v254, %v253
        %v282 = vpack.c.b16 %v256, %v255
        %v283 = vpack.c.b16 %v258, %v257
        %v284 = vpack.c.b16 %v260, %v259
        %v285 = vpack.c.b16 %v262, %v261
        %v286 = vpack.c.b16 %v264, %v263
        %v287 = vpack.c.b16 %v266, %v265
        %v288 = vpack.c.b16 %v268, %v267
        %v289 = vpack.c.b16 %v270, %v269
        %v290 = vpack.c.b16 %v272, %v271
        %v291 = vpack.c.b16 %v274, %v273
        %v292 = vpack.c.b16 %v276, %v275
        %v301 = vunpack.c.l.b16 %v205
        %v302 = vunpack.c.l.b16 %v206
        %v303 = vunpack.c.l.b16 %v207
        %v304 = vunpack.c.l.b16 %v208
        %v305 = vunpack.c.l.b16 %v209
        %v306 = vunpack.c.l.b16 %v210
        %v307 = vunpack.c.l.b16 %v211
        %v308 = vunpack.c.l.b16 %v212
        %v309 = vpack.c.b16 %v302, %v301
        %v310 = vpack.c.b16 %v304, %v303
        %v311 = vpack.c.b16 %v306, %v305
        %v312 = vpack.c.b16 %v308, %v307
        %vm317 = vcmask 523264
        %v319 = vsel %vm317, %v277, 0
        %v322 = vsel %vm317, %v278, 0
        %v325 = vsel %vm317, %v279, 0
        %v328 = vsel %vm317, %v280, 0
        %v331 = vsel %vm317, %v281, 0
        %v334 = vsel %vm317, %v282, 0
        %v337 = vsel %vm317, %v283, 0
        %v340 = vsel %vm317, %v284, 0
        %v343 = vsel %vm317, %v285, 0
        %v346 = vsel %vm317, %v286, 0
        %v349 = vsel %vm317, %v287, 0
        %v352 = vsel %vm317, %v288, 0
        %v355 = vsel %vm317, %v289, 0
        %v358 = vsel %vm317, %v290, 0
        %v361 = vsel %vm317, %v291, 0
        %v364 = vsel %vm317, %v292, 0
        %366 = vmatprep.subr.bf16.mxu0 0
        %367 = vmatpush1.bf16.msra.mxu0 %v309
        %368 = vmatprep.subr.bf16.mxu0 0
        %369 = vmatpush1.bf16.msra.mxu0 %v310
        %370 = vmatprep.subr.bf16.mxu0 0
        %371 = vmatpush1.bf16.msra.mxu0 %v311
        %372 = vmatprep.subr.bf16.mxu0 0
        %373 = vmatpush1.bf16.msra.mxu0 %v312
        %374 = vmatprep.subr.bf16.mxu0 0
        %375 = vmatpush1.bf16.msra.mxu0 0
        %376 = vmatprep.subr.bf16.mxu0 0
        %377 = vmatpush1.bf16.msra.mxu0 0
        %378 = vmatprep.subr.bf16.mxu0 0
        %379 = vmatpush1.bf16.msra.mxu0 0
        %380 = vmatprep.subr.bf16.mxu0 0
        %381 = vmatpush1.bf16.msra.mxu0 0
        %382 = vmatprep.subr.bf16.mxu0 0
        %383 = vmatpush1.bf16.msra.mxu0 0
        %384 = vmatprep.subr.bf16.mxu0 0
        %385 = vmatpush1.bf16.msra.mxu0 0
        %386 = vmatprep.subr.bf16.mxu0 0
        %387 = vmatpush1.bf16.msra.mxu0 0
        %388 = vmatprep.subr.bf16.mxu0 0
        %389 = vmatpush1.bf16.msra.mxu0 0
        %390 = vmatprep.subr.bf16.mxu0 0
        %391 = vmatpush1.bf16.msra.mxu0 0
        %392 = vmatprep.subr.bf16.mxu0 0
        %393 = vmatpush1.bf16.msra.mxu0 0
        %394 = vmatprep.subr.bf16.mxu0 0
        %395 = vmatpush1.bf16.msra.mxu0 0
        %396 = vmatprep.subr.bf16.mxu0 0
        %397 = vmatpush1.bf16.msra.mxu0 0
        %398 = vmatprep.mubr.bf16.mxu0 0
        %399 = vmatmul.mubr.bf16.gmra.mrb[0].mxu0 %v319
        %v400 = vpop.f32.mrb[0].mxu0
        %v401 = vadd.f32 0.0, %v400
        %v402 = vpop.f32.mrb[0].mxu0
        %v403 = vpop.f32.mrb[0].mxu0
        %v404 = vadd.f32 0.0, %v403
        %v405 = vpop.f32.mrb[0].mxu0
        %406 = vmatprep.mubr.bf16.mxu0 0
        %407 = vmatmul.mubr.bf16.gmra.mrb[0].mxu0 %v322
        %v408 = vpop.f32.mrb[0].mxu0
        %v409 = vadd.f32 0.0, %v408
        %v410 = vpop.f32.mrb[0].mxu0
        %v411 = vpop.f32.mrb[0].mxu0
        %v412 = vadd.f32 0.0, %v411
        %v413 = vpop.f32.mrb[0].mxu0
        %414 = vmatprep.mubr.bf16.mxu0 0
        %415 = vmatmul.mubr.bf16.gmra.mrb[0].mxu0 %v325
        %v416 = vpop.f32.mrb[0].mxu0
        %v417 = vadd.f32 0.0, %v416
        %v418 = vpop.f32.mrb[0].mxu0
        %v419 = vpop.f32.mrb[0].mxu0
        %v420 = vadd.f32 0.0, %v419
        %v421 = vpop.f32.mrb[0].mxu0
        %422 = vmatprep.mubr.bf16.mxu0 0
        %423 = vmatmul.mubr.bf16.gmra.mrb[0].mxu0 %v328
        %v424 = vpop.f32.mrb[0].mxu0
        %v425 = vadd.f32 0.0, %v424
        %v426 = vpop.f32.mrb[0].mxu0
        %v427 = vpop.f32.mrb[0].mxu0
        %v428 = vadd.f32 0.0, %v427
        %v429 = vpop.f32.mrb[0].mxu0
        %430 = vmatprep.mubr.bf16.mxu0 0
        %431 = vmatmul.mubr.bf16.gmra.mrb[0].mxu0 %v331
        %v432 = vpop.f32.mrb[0].mxu0
        %v433 = vadd.f32 0.0, %v432
        %v434 = vpop.f32.mrb[0].mxu0
        %v435 = vpop.f32.mrb[0].mxu0
        %v436 = vadd.f32 0.0, %v435
        %v437 = vpop.f32.mrb[0].mxu0
        %438 = vmatprep.mubr.bf16.mxu0 0
        %439 = vmatmul.mubr.bf16.gmra.mrb[0].mxu0 %v334
        %v440 = vpop.f32.mrb[0].mxu0
        %v441 = vadd.f32 0.0, %v440
        %v442 = vpop.f32.mrb[0].mxu0
        %v443 = vpop.f32.mrb[0].mxu0
        %v444 = vadd.f32 0.0, %v443
        %v445 = vpop.f32.mrb[0].mxu0
        %446 = vmatprep.mubr.bf16.mxu0 0
        %447 = vmatmul.mubr.bf16.gmra.mrb[0].mxu0 %v337
        %v448 = vpop.f32.mrb[0].mxu0
        %v449 = vadd.f32 0.0, %v448
        %v450 = vpop.f32.mrb[0].mxu0
        %v451 = vpop.f32.mrb[0].mxu0
        %v452 = vadd.f32 0.0, %v451
        %v453 = vpop.f32.mrb[0].mxu0
        %454 = vmatprep.mubr.bf16.mxu0 0
        %455 = vmatmul.mubr.bf16.gmra.mrb[0].mxu0 %v340
        %v456 = vpop.f32.mrb[0].mxu0
        %v457 = vadd.f32 0.0, %v456
        %v458 = vpop.f32.mrb[0].mxu0
        %v459 = vpop.f32.mrb[0].mxu0
        %v460 = vadd.f32 0.0, %v459
        %v461 = vpop.f32.mrb[0].mxu0
        %462 = vmatprep.mubr.bf16.mxu0 0
        %463 = vmatmul.mubr.bf16.gmra.mrb[0].mxu0 %v343
        %v464 = vpop.f32.mrb[0].mxu0
        %v465 = vadd.f32 0.0, %v464
        %v466 = vpop.f32.mrb[0].mxu0
        %v467 = vpop.f32.mrb[0].mxu0
        %v468 = vadd.f32 0.0, %v467
        %v469 = vpop.f32.mrb[0].mxu0
        %470 = vmatprep.mubr.bf16.mxu0 0
        %471 = vmatmul.mubr.bf16.gmra.mrb[0].mxu0 %v346
        %v472 = vpop.f32.mrb[0].mxu0
        %v473 = vadd.f32 0.0, %v472
        %v474 = vpop.f32.mrb[0].mxu0
        %v475 = vpop.f32.mrb[0].mxu0
        %v476 = vadd.f32 0.0, %v475
        %v477 = vpop.f32.mrb[0].mxu0
        %478 = vmatprep.mubr.bf16.mxu0 0
        %479 = vmatmul.mubr.bf16.gmra.mrb[0].mxu0 %v349
        %v480 = vpop.f32.mrb[0].mxu0
        %v481 = vadd.f32 0.0, %v480
        %v482 = vpop.f32.mrb[0].mxu0
        %v483 = vpop.f32.mrb[0].mxu0
        %v484 = vadd.f32 0.0, %v483
        %v485 = vpop.f32.mrb[0].mxu0
        %486 = vmatprep.mubr.bf16.mxu0 0
        %487 = vmatmul.mubr.bf16.gmra.mrb[0].mxu0 %v352
        %v488 = vpop.f32.mrb[0].mxu0
        %v489 = vadd.f32 0.0, %v488
        %v490 = vpop.f32.mrb[0].mxu0
        %v491 = vpop.f32.mrb[0].mxu0
        %v492 = vadd.f32 0.0, %v491
        %v493 = vpop.f32.mrb[0].mxu0
        %494 = vmatprep.mubr.bf16.mxu0 0
        %495 = vmatmul.mubr.bf16.gmra.mrb[0].mxu0 %v355
        %v496 = vpop.f32.mrb[0].mxu0
        %v497 = vadd.f32 0.0, %v496
        %v498 = vpop.f32.mrb[0].mxu0
        %v499 = vpop.f32.mrb[0].mxu0
        %v500 = vadd.f32 0.0, %v499
        %v501 = vpop.f32.mrb[0].mxu0
        %502 = vmatprep.mubr.bf16.mxu0 0
        %503 = vmatmul.mubr.bf16.gmra.mrb[0].mxu0 %v358
        %v504 = vpop.f32.mrb[0].mxu0
        %v505 = vadd.f32 0.0, %v504
        %v506 = vpop.f32.mrb[0].mxu0
        %v507 = vpop.f32.mrb[0].mxu0
        %v508 = vadd.f32 0.0, %v507
        %v509 = vpop.f32.mrb[0].mxu0
        %510 = vmatprep.mubr.bf16.mxu0 0
        %511 = vmatmul.mubr.bf16.gmra.mrb[0].mxu0 %v361
        %v512 = vpop.f32.mrb[0].mxu0
        %v513 = vadd.f32 0.0, %v512
        %v514 = vpop.f32.mrb[0].mxu0
        %v515 = vpop.f32.mrb[0].mxu0
        %v516 = vadd.f32 0.0, %v515
        %v517 = vpop.f32.mrb[0].mxu0
        %518 = vmatprep.mubr.bf16.mxu0 0
        %519 = vmatmul.mubr.bf16.gmra.mrb[0].mxu0 %v364
        %v520 = vpop.f32.mrb[0].mxu0
        %v521 = vadd.f32 0.0, %v520
        %v522 = vpop.f32.mrb[0].mxu0
        %v523 = vpop.f32.mrb[0].mxu0
        %v524 = vadd.f32 0.0, %v523
        %v525 = vpop.f32.mrb[0].mxu0
        %526 = vdwg.mxu0
        %v527 = vmax.f32 %v401, 0.0
        %v528 = vmax.f32 %v404, 0.0
        %v529 = vmax.f32 %v409, 0.0
        %v530 = vmax.f32 %v412, 0.0
        %v531 = vmax.f32 %v417, 0.0
        %v532 = vmax.f32 %v420, 0.0
        %v533 = vmax.f32 %v425, 0.0
        %v534 = vmax.f32 %v428, 0.0
        %v535 = vmax.f32 %v433, 0.0
        %v536 = vmax.f32 %v436, 0.0
        %v537 = vmax.f32 %v441, 0.0
        %v538 = vmax.f32 %v444, 0.0
        %v539 = vmax.f32 %v449, 0.0
        %v540 = vmax.f32 %v452, 0.0
        %v541 = vmax.f32 %v457, 0.0
        %v542 = vmax.f32 %v460, 0.0
        %v543 = vmax.f32 %v465, 0.0
        %v544 = vmax.f32 %v468, 0.0
        %v545 = vmax.f32 %v473, 0.0
        %v546 = vmax.f32 %v476, 0.0
        %v547 = vmax.f32 %v481, 0.0
        %v548 = vmax.f32 %v484, 0.0
        %v549 = vmax.f32 %v489, 0.0
        %v550 = vmax.f32 %v492, 0.0
        %v551 = vmax.f32 %v497, 0.0
        %v552 = vmax.f32 %v500, 0.0
        %v553 = vmax.f32 %v505, 0.0
        %v554 = vmax.f32 %v508, 0.0
        %v555 = vmax.f32 %v513, 0.0
        %v556 = vmax.f32 %v516, 0.0
        %v557 = vmax.f32 %v521, 0.0
        %v558 = vmax.f32 %v524, 0.0
        %v559 = vpack.c.bf16 %v528, %v527
        %v560 = vpack.c.bf16 %v530, %v529
        %v561 = vpack.c.bf16 %v532, %v531
        %v562 = vpack.c.bf16 %v534, %v533
        %v563 = vpack.c.bf16 %v536, %v535
        %v564 = vpack.c.bf16 %v538, %v537
        %v565 = vpack.c.bf16 %v540, %v539
        %v566 = vpack.c.bf16 %v542, %v541
        %v567 = vpack.c.bf16 %v544, %v543
        %v568 = vpack.c.bf16 %v546, %v545
        %v569 = vpack.c.bf16 %v548, %v547
        %v570 = vpack.c.bf16 %v550, %v549
        %v571 = vpack.c.bf16 %v552, %v551
        %v572 = vpack.c.bf16 %v554, %v553
        %v573 = vpack.c.bf16 %v556, %v555
        %v574 = vpack.c.bf16 %v558, %v557
        %v575 = vld [vmem:[%s2] sm:$0xf]
        %v576 = vld [vmem:[%s2 + $0x4] sm:$0xf]
        %v577 = vld [vmem:[%s2 + $0x8] sm:$0xf]
        %v578 = vld [vmem:[%s2 + $0xc] sm:$0xf]
        %v579 = vld [vmem:[%s2 + $0x10] sm:$0xf]
        %v580 = vld [vmem:[%s2 + $0x14] sm:$0xf]
        %v581 = vld [vmem:[%s2 + $0x18] sm:$0xf]
        %v582 = vld [vmem:[%s2 + $0x1c] sm:$0xf]
        %v583 = vld [vmem:[%s2 + $0x20] sm:$0xf]
        %v584 = vld [vmem:[%s2 + $0x24] sm:$0xf]
        %v585 = vld [vmem:[%s2 + $0x28] sm:$0xf]
        %v586 = vld [vmem:[%s2 + $0x2c] sm:$0xf]
        %v587 = vld [vmem:[%s2 + $0x30] sm:$0xf]
        %v588 = vld [vmem:[%s2 + $0x34] sm:$0xf]
        %v589 = vld [vmem:[%s2 + $0x38] sm:$0xf]
        %v590 = vld [vmem:[%s2 + $0x3c] sm:$0xf]
        %v607 = vunpack.c.l.b16 %v575
        %v608 = vunpack.c.l.b16 %v576
        %v609 = vunpack.c.l.b16 %v577
        %v610 = vunpack.c.l.b16 %v578
        %v611 = vunpack.c.l.b16 %v579
        %v612 = vunpack.c.l.b16 %v580
        %v613 = vunpack.c.l.b16 %v581
        %v614 = vunpack.c.l.b16 %v582
        %v615 = vunpack.c.l.b16 %v583
        %v616 = vunpack.c.l.b16 %v584
        %v617 = vunpack.c.l.b16 %v585
        %v618 = vunpack.c.l.b16 %v586
        %v619 = vunpack.c.l.b16 %v587
        %v620 = vunpack.c.l.b16 %v588
        %v621 = vunpack.c.l.b16 %v589
        %v622 = vunpack.c.l.b16 %v590
        %v623 = vpack.c.b16 %v608, %v607
        %v624 = vpack.c.b16 %v610, %v609
        %v625 = vpack.c.b16 %v612, %v611
        %v626 = vpack.c.b16 %v614, %v613
        %v627 = vpack.c.b16 %v616, %v615
        %v628 = vpack.c.b16 %v618, %v617
        %v629 = vpack.c.b16 %v620, %v619
        %v630 = vpack.c.b16 %v622, %v621
        %639 = vmatprep.subr.bf16.mxu0 0
        %640 = vmatpush1.bf16.msra.mxu0 %v623
        %641 = vmatprep.subr.bf16.mxu0 0
        %642 = vmatpush1.bf16.msra.mxu0 %v624
        %643 = vmatprep.subr.bf16.mxu0 0
        %644 = vmatpush1.bf16.msra.mxu0 %v625
        %645 = vmatprep.subr.bf16.mxu0 0
        %646 = vmatpush1.bf16.msra.mxu0 %v626
        %647 = vmatprep.subr.bf16.mxu0 0
        %648 = vmatpush1.bf16.msra.mxu0 %v627
        %649 = vmatprep.subr.bf16.mxu0 0
        %650 = vmatpush1.bf16.msra.mxu0 %v628
        %651 = vmatprep.subr.bf16.mxu0 0
        %652 = vmatpush1.bf16.msra.mxu0 %v629
        %653 = vmatprep.subr.bf16.mxu0 0
        %654 = vmatpush1.bf16.msra.mxu0 %v630
        %655 = vmatprep.subr.bf16.mxu0 0
        %656 = vmatpush1.bf16.msra.mxu0 0
        %657 = vmatprep.subr.bf16.mxu0 0
        %658 = vmatpush1.bf16.msra.mxu0 0
        %659 = vmatprep.subr.bf16.mxu0 0
        %660 = vmatpush1.bf16.msra.mxu0 0
        %661 = vmatprep.subr.bf16.mxu0 0
        %662 = vmatpush1.bf16.msra.mxu0 0
        %663 = vmatprep.subr.bf16.mxu0 0
        %664 = vmatpush1.bf16.msra.mxu0 0
        %665 = vmatprep.subr.bf16.mxu0 0
        %666 = vmatpush1.bf16.msra.mxu0 0
        %667 = vmatprep.subr.bf16.mxu0 0
        %668 = vmatpush1.bf16.msra.mxu0 0
        %669 = vmatprep.subr.bf16.mxu0 0
        %670 = vmatpush1.bf16.msra.mxu0 0
        %671 = vmatprep.mubr.bf16.mxu0 0
        %672 = vmatmul.mubr.bf16.gmra.mrb[0].mxu0 %v559
        %v673 = vpop.f32.mrb[0].mxu0
        %v674 = vadd.f32 0.0, %v673
        %v675 = vpop.f32.mrb[0].mxu0
        %v676 = vpop.f32.mrb[0].mxu0
        %v677 = vadd.f32 0.0, %v676
        %v678 = vpop.f32.mrb[0].mxu0
        %679 = vmatprep.mubr.bf16.mxu0 0
        %680 = vmatmul.mubr.bf16.gmra.mrb[0].mxu0 %v560
        %v681 = vpop.f32.mrb[0].mxu0
        %v682 = vadd.f32 0.0, %v681
        %v683 = vpop.f32.mrb[0].mxu0
        %v684 = vpop.f32.mrb[0].mxu0
        %v685 = vadd.f32 0.0, %v684
        %v686 = vpop.f32.mrb[0].mxu0
        %687 = vmatprep.mubr.bf16.mxu0 0
        %688 = vmatmul.mubr.bf16.gmra.mrb[0].mxu0 %v561
        %v689 = vpop.f32.mrb[0].mxu0
        %v690 = vadd.f32 0.0, %v689
        %v691 = vpop.f32.mrb[0].mxu0
        %v692 = vpop.f32.mrb[0].mxu0
        %v693 = vadd.f32 0.0, %v692
        %v694 = vpop.f32.mrb[0].mxu0
        %695 = vmatprep.mubr.bf16.mxu0 0
        %696 = vmatmul.mubr.bf16.gmra.mrb[0].mxu0 %v562
        %v697 = vpop.f32.mrb[0].mxu0
        %v698 = vadd.f32 0.0, %v697
        %v699 = vpop.f32.mrb[0].mxu0
        %v700 = vpop.f32.mrb[0].mxu0
        %v701 = vadd.f32 0.0, %v700
        %v702 = vpop.f32.mrb[0].mxu0
        %703 = vmatprep.mubr.bf16.mxu0 0
        %704 = vmatmul.mubr.bf16.gmra.mrb[0].mxu0 %v563
        %v705 = vpop.f32.mrb[0].mxu0
        %v706 = vadd.f32 0.0, %v705
        %v707 = vpop.f32.mrb[0].mxu0
        %v708 = vpop.f32.mrb[0].mxu0
        %v709 = vadd.f32 0.0, %v708
        %v710 = vpop.f32.mrb[0].mxu0
        %711 = vmatprep.mubr.bf16.mxu0 0
        %712 = vmatmul.mubr.bf16.gmra.mrb[0].mxu0 %v564
        %v713 = vpop.f32.mrb[0].mxu0
        %v714 = vadd.f32 0.0, %v713
        %v715 = vpop.f32.mrb[0].mxu0
        %v716 = vpop.f32.mrb[0].mxu0
        %v717 = vadd.f32 0.0, %v716
        %v718 = vpop.f32.mrb[0].mxu0
        %719 = vmatprep.mubr.bf16.mxu0 0
        %720 = vmatmul.mubr.bf16.gmra.mrb[0].mxu0 %v565
        %v721 = vpop.f32.mrb[0].mxu0
        %v722 = vadd.f32 0.0, %v721
        %v723 = vpop.f32.mrb[0].mxu0
        %v724 = vpop.f32.mrb[0].mxu0
        %v725 = vadd.f32 0.0, %v724
        %v726 = vpop.f32.mrb[0].mxu0
        %727 = vmatprep.mubr.bf16.mxu0 0
        %728 = vmatmul.mubr.bf16.gmra.mrb[0].mxu0 %v566
        %v729 = vpop.f32.mrb[0].mxu0
        %v730 = vadd.f32 0.0, %v729
        %v731 = vpop.f32.mrb[0].mxu0
        %v732 = vpop.f32.mrb[0].mxu0
        %v733 = vadd.f32 0.0, %v732
        %v734 = vpop.f32.mrb[0].mxu0
        %735 = vmatprep.mubr.bf16.mxu0 0
        %736 = vmatmul.mubr.bf16.gmra.mrb[0].mxu0 %v567
        %v737 = vpop.f32.mrb[0].mxu0
        %v738 = vadd.f32 0.0, %v737
        %v739 = vpop.f32.mrb[0].mxu0
        %v740 = vpop.f32.mrb[0].mxu0
        %v741 = vadd.f32 0.0, %v740
        %v742 = vpop.f32.mrb[0].mxu0
        %743 = vmatprep.mubr.bf16.mxu0 0
        %744 = vmatmul.mubr.bf16.gmra.mrb[0].mxu0 %v568
        %v745 = vpop.f32.mrb[0].mxu0
        %v746 = vadd.f32 0.0, %v745
        %v747 = vpop.f32.mrb[0].mxu0
        %v748 = vpop.f32.mrb[0].mxu0
        %v749 = vadd.f32 0.0, %v748
        %v750 = vpop.f32.mrb[0].mxu0
        %751 = vmatprep.mubr.bf16.mxu0 0
        %752 = vmatmul.mubr.bf16.gmra.mrb[0].mxu0 %v569
        %v753 = vpop.f32.mrb[0].mxu0
        %v754 = vadd.f32 0.0, %v753
        %v755 = vpop.f32.mrb[0].mxu0
        %v756 = vpop.f32.mrb[0].mxu0
        %v757 = vadd.f32 0.0, %v756
        %v758 = vpop.f32.mrb[0].mxu0
        %759 = vmatprep.mubr.bf16.mxu0 0
        %760 = vmatmul.mubr.bf16.gmra.mrb[0].mxu0 %v570
        %v761 = vpop.f32.mrb[0].mxu0
        %v762 = vadd.f32 0.0, %v761
        %v763 = vpop.f32.mrb[0].mxu0
        %v764 = vpop.f32.mrb[0].mxu0
        %v765 = vadd.f32 0.0, %v764
        %v766 = vpop.f32.mrb[0].mxu0
        %767 = vmatprep.mubr.bf16.mxu0 0
        %768 = vmatmul.mubr.bf16.gmra.mrb[0].mxu0 %v571
        %v769 = vpop.f32.mrb[0].mxu0
        %v770 = vadd.f32 0.0, %v769
        %v771 = vpop.f32.mrb[0].mxu0
        %v772 = vpop.f32.mrb[0].mxu0
        %v773 = vadd.f32 0.0, %v772
        %v774 = vpop.f32.mrb[0].mxu0
        %775 = vmatprep.mubr.bf16.mxu0 0
        %776 = vmatmul.mubr.bf16.gmra.mrb[0].mxu0 %v572
        %v777 = vpop.f32.mrb[0].mxu0
        %v778 = vadd.f32 0.0, %v777
        %v779 = vpop.f32.mrb[0].mxu0
        %v780 = vpop.f32.mrb[0].mxu0
        %v781 = vadd.f32 0.0, %v780
        %v782 = vpop.f32.mrb[0].mxu0
        %783 = vmatprep.mubr.bf16.mxu0 0
        %784 = vmatmul.mubr.bf16.gmra.mrb[0].mxu0 %v573
        %v785 = vpop.f32.mrb[0].mxu0
        %v786 = vadd.f32 0.0, %v785
        %v787 = vpop.f32.mrb[0].mxu0
        %v788 = vpop.f32.mrb[0].mxu0
        %v789 = vadd.f32 0.0, %v788
        %v790 = vpop.f32.mrb[0].mxu0
        %791 = vmatprep.mubr.bf16.mxu0 0
        %792 = vmatmul.mubr.bf16.gmra.mrb[0].mxu0 %v574
        %v793 = vpop.f32.mrb[0].mxu0
        %v794 = vadd.f32 0.0, %v793
        %v795 = vpop.f32.mrb[0].mxu0
        %v796 = vpop.f32.mrb[0].mxu0
        %v797 = vadd.f32 0.0, %v796
        %v798 = vpop.f32.mrb[0].mxu0
        %799 = vdwg.mxu0
        %v800 = vadd.f32 %v527, %v674
        %v801 = vadd.f32 %v528, %v677
        %v802 = vadd.f32 %v529, %v682
        %v803 = vadd.f32 %v530, %v685
        %v804 = vadd.f32 %v531, %v690
        %v805 = vadd.f32 %v532, %v693
        %v806 = vadd.f32 %v533, %v698
        %v807 = vadd.f32 %v534, %v701
        %v808 = vadd.f32 %v535, %v706
        %v809 = vadd.f32 %v536, %v709
        %v810 = vadd.f32 %v537, %v714
        %v811 = vadd.f32 %v538, %v717
        %v812 = vadd.f32 %v539, %v722
        %v813 = vadd.f32 %v540, %v725
        %v814 = vadd.f32 %v541, %v730
        %v815 = vadd.f32 %v542, %v733
        %v816 = vadd.f32 %v543, %v738
        %v817 = vadd.f32 %v544, %v741
        %v818 = vadd.f32 %v545, %v746
        %v819 = vadd.f32 %v546, %v749
        %v820 = vadd.f32 %v547, %v754
        %v821 = vadd.f32 %v548, %v757
        %v822 = vadd.f32 %v549, %v762
        %v823 = vadd.f32 %v550, %v765
        %v824 = vadd.f32 %v551, %v770
        %v825 = vadd.f32 %v552, %v773
        %v826 = vadd.f32 %v553, %v778
        %v827 = vadd.f32 %v554, %v781
        %v828 = vadd.f32 %v555, %v786
        %v829 = vadd.f32 %v556, %v789
        %v830 = vadd.f32 %v557, %v794
        %v831 = vadd.f32 %v558, %v797
        %v832 = vpack.c.bf16 %v801, %v800
        %v833 = vpack.c.bf16 %v803, %v802
        %v834 = vpack.c.bf16 %v805, %v804
        %v835 = vpack.c.bf16 %v807, %v806
        %v836 = vpack.c.bf16 %v809, %v808
        %v837 = vpack.c.bf16 %v811, %v810
        %v838 = vpack.c.bf16 %v813, %v812
        %v839 = vpack.c.bf16 %v815, %v814
        %v840 = vpack.c.bf16 %v817, %v816
        %v841 = vpack.c.bf16 %v819, %v818
        %v842 = vpack.c.bf16 %v821, %v820
        %v843 = vpack.c.bf16 %v823, %v822
        %v844 = vpack.c.bf16 %v825, %v824
        %v845 = vpack.c.bf16 %v827, %v826
        %v846 = vpack.c.bf16 %v829, %v828
        %v847 = vpack.c.bf16 %v831, %v830
        %v864 = vunpack.c.l.b16 %v832
        %v865 = vunpack.c.h.b16 %v832
        %v866 = vunpack.c.l.b16 %v833
        %v867 = vunpack.c.h.b16 %v833
        %v868 = vunpack.c.l.b16 %v834
        %v869 = vunpack.c.h.b16 %v834
        %v870 = vunpack.c.l.b16 %v835
        %v871 = vunpack.c.h.b16 %v835
        %v872 = vunpack.c.l.b16 %v836
        %v873 = vunpack.c.h.b16 %v836
        %v874 = vunpack.c.l.b16 %v837
        %v875 = vunpack.c.h.b16 %v837
        %v876 = vunpack.c.l.b16 %v838
        %v877 = vunpack.c.h.b16 %v838
        %v878 = vunpack.c.l.b16 %v839
        %v879 = vunpack.c.h.b16 %v839
        %v880 = vunpack.c.l.b16 %v840
        %v881 = vunpack.c.h.b16 %v840
        %v882 = vunpack.c.l.b16 %v841
        %v883 = vunpack.c.h.b16 %v841
        %v884 = vunpack.c.l.b16 %v842
        %v885 = vunpack.c.h.b16 %v842
        %v886 = vunpack.c.l.b16 %v843
        %v887 = vunpack.c.h.b16 %v843
        %v888 = vunpack.c.l.b16 %v844
        %v889 = vunpack.c.h.b16 %v844
        %v890 = vunpack.c.l.b16 %v845
        %v891 = vunpack.c.h.b16 %v845
        %v892 = vunpack.c.l.b16 %v846
        %v893 = vunpack.c.h.b16 %v846
        %v894 = vunpack.c.l.b16 %v847
        %v895 = vunpack.c.h.b16 %v847
        %v896 = vpack.c.b16 %v864, %v864
        %v897 = vpack.c.b16 %v865, %v865
        %v898 = vpack.c.b16 %v866, %v866
        %v899 = vpack.c.b16 %v867, %v867
        %v900 = vpack.c.b16 %v868, %v868
        %v901 = vpack.c.b16 %v869, %v869
        %v902 = vpack.c.b16 %v870, %v870
        %v903 = vpack.c.b16 %v871, %v871
        %v904 = vpack.c.b16 %v872, %v872
        %v905 = vpack.c.b16 %v873, %v873
        %v906 = vpack.c.b16 %v874, %v874
        %v907 = vpack.c.b16 %v875, %v875
        %v908 = vpack.c.b16 %v876, %v876
        %v909 = vpack.c.b16 %v877, %v877
        %v910 = vpack.c.b16 %v878, %v878
        %v911 = vpack.c.b16 %v879, %v879
        %v912 = vpack.c.b16 %v880, %v880
        %v913 = vpack.c.b16 %v881, %v881
        %v914 = vpack.c.b16 %v882, %v882
        %v915 = vpack.c.b16 %v883, %v883
        %v916 = vpack.c.b16 %v884, %v884
        %v917 = vpack.c.b16 %v885, %v885
        %v918 = vpack.c.b16 %v886, %v886
        %v919 = vpack.c.b16 %v887, %v887
        %v920 = vpack.c.b16 %v888, %v888
        %v921 = vpack.c.b16 %v889, %v889
        %v922 = vpack.c.b16 %v890, %v890
        %v923 = vpack.c.b16 %v891, %v891
        %v924 = vpack.c.b16 %v892, %v892
        %v925 = vpack.c.b16 %v893, %v893
        %v926 = vpack.c.b16 %v894, %v894
        %v927 = vpack.c.b16 %v895, %v895
        %960 = vst [vmem:[%s164] sm:$0xf] %v896
        %961 = vst [vmem:[%s164 + $0x4] sm:$0xf] %v897
        %962 = vst [vmem:[%s164 + $0x8] sm:$0xf] %v898
        %963 = vst [vmem:[%s164 + $0xc] sm:$0xf] %v899
        %964 = vst [vmem:[%s164 + $0x10] sm:$0xf] %v900
        %965 = vst [vmem:[%s164 + $0x14] sm:$0xf] %v901
        %966 = vst [vmem:[%s164 + $0x18] sm:$0xf] %v902
        %967 = vst [vmem:[%s164 + $0x1c] sm:$0xf] %v903
        %968 = vst [vmem:[%s164 + $0x20] sm:$0xf] %v904
        %969 = vst [vmem:[%s164 + $0x24] sm:$0xf] %v905
        %970 = vst [vmem:[%s164 + $0x28] sm:$0xf] %v906
        %971 = vst [vmem:[%s164 + $0x2c] sm:$0xf] %v907
        %972 = vst [vmem:[%s164 + $0x30] sm:$0xf] %v908
        %973 = vst [vmem:[%s164 + $0x34] sm:$0xf] %v909
        %974 = vst [vmem:[%s164 + $0x38] sm:$0xf] %v910
        %975 = vst [vmem:[%s164 + $0x3c] sm:$0xf] %v911
        %976 = vst [vmem:[%s164 + $0x40] sm:$0xf] %v912
        %977 = vst [vmem:[%s164 + $0x44] sm:$0xf] %v913
        %978 = vst [vmem:[%s164 + $0x48] sm:$0xf] %v914
        %979 = vst [vmem:[%s164 + $0x4c] sm:$0xf] %v915
        %980 = vst [vmem:[%s164 + $0x50] sm:$0xf] %v916
        %981 = vst [vmem:[%s164 + $0x54] sm:$0xf] %v917
        %982 = vst [vmem:[%s164 + $0x58] sm:$0xf] %v918
        %983 = vst [vmem:[%s164 + $0x5c] sm:$0xf] %v919
        %984 = vst [vmem:[%s164 + $0x60] sm:$0xf] %v920
        %985 = vst [vmem:[%s164 + $0x64] sm:$0xf] %v921
        %986 = vst [vmem:[%s164 + $0x68] sm:$0xf] %v922
        %987 = vst [vmem:[%s164 + $0x6c] sm:$0xf] %v923
        %988 = vst [vmem:[%s164 + $0x70] sm:$0xf] %v924
        %989 = vst [vmem:[%s164 + $0x74] sm:$0xf] %v925
        %990 = vst [vmem:[%s164 + $0x78] sm:$0xf] %v926
        %991 = vst [vmem:[%s164 + $0x7c] sm:$0xf] %v927
        %s992 = sand.u32 %s93, 1
        %s993 = scalar_lea.sflag [#allocation3], %s992
        %s994 = sand.u32 %s93, 1
        %s995 = smul.addr %s994, 128
        %s996 = scalar_lea.vmem [#allocation2], %s995
        // Predicated region
        $region33: #{_capsule_forward_packed.1} parent=31 // pred_check
          %p997 = pneg %p103
        $region34: #{_capsule_forward_packed.1} parent=31 // pred_check_branch
          %999 = sbr.rel (%p997) target = $region36
        $region35: #{_capsule_forward_packed.1} parent=31 // pred_region
          %s1000 = smul.u32 32, %s17
          %s1002 = ssub.s32 2048, 2048
          %1003 = vsyncadd %s993, %s1002
          %s1004 = smul.addr %s1000, 64
          %s1005 = scalar_lea.hbm %s3, %s1004
          %s1006 = sshll.u32 %s996, 4
          %s1007 = int_to_ptr.vmem [resolvable:$true] %s1006
          %1012 = dma.vmem_to_hbm [thread:$0]  %s1007, 2048, %s1005, %s993, 64, 64, 4
        $region36: #{_capsule_forward_packed.1} parent=31 // pred_fallthru
          _
      $region32: #{_capsule_forward_packed.1} parent=5 // pred_fallthru
        _
      %p1013 = scmp.le.s32.totalorder 2, %s12
      // Predicated region
      $region37: #{_capsule_forward_packed.1} parent=5 // pred_check
        %p1014 = pneg %p1013
      $region38: #{_capsule_forward_packed.1} parent=5 // pred_check_branch
        %1016 = sbr.rel (%p1014) target = $region40
      $region39: #{_capsule_forward_packed.1} parent=5 // pred_region
        %s1017 = ssub.s32 %s12, 2
        // Predicated region
        $region41: #{_capsule_forward_packed.1} parent=39 // pred_check
          %p1018 = pneg %p109
        $region42: #{_capsule_forward_packed.1} parent=39 // pred_check_branch
          %1020 = sbr.rel (%p1018) target = $region44
        $region43: #{_capsule_forward_packed.1} parent=39 // pred_region
          %s1021 = sand.u32 %s94, 1
          %s1022 = scalar_lea.sflag [#allocation3], %s1021
          %s1023 = sand.u32 %s94, 1
          %s1024 = smul.addr %s1023, 128
          %s1025 = scalar_lea.vmem [#allocation2], %s1024
          %1026 = dma.done %s1022, 2048
        $region44: #{_capsule_forward_packed.1} parent=39 // pred_fallthru
          _
      $region40: #{_capsule_forward_packed.1} parent=5 // pred_fallthru
        _
    $region6: #{_capsule_forward_packed.1} parent=1 // loop_footer
      %s16 = sadd.s32 1, %s12
    $region7: #{_capsule_forward_packed.1} parent=1 // loop_footer_branch
      %11 = sbr.rel target = $region3
    $region8: #{_capsule_forward_packed.1} parent=1 // loop_exit
      _
    %1027 = vsyncpa [#allocation3], 1
    %s1028 = scalar_lea.sflag [#allocation3], 1
    %1029 = vsyncpa %s1028, 1

</llo_original>
